<compile_context>
chip_gen: v7x
topology: tpu7x:2x2x1
jax: 0.10.0
libtpu: 0.0.40
codegen_flags: <defaults>
</compile_context>

<pallas_src>
import functools

import jax
import jax.numpy as jnp
from jax.experimental import pallas as pl
from jax.experimental.pallas import tpu as pltpu

IN_FEATURES = 32
H1 = 128
H2 = 512
OUT_FEATURES = 4
LOGIT_PAD = 128        # lane-dense width for the in-register fc3 / log_softmax
DEFAULT_TB = 2048      # batch tile upper bound (multiple of 8)


def _round_up(n, m):
    return ((n + m - 1) // m) * m


def mlp_kernel(x_ref, w1_ref, b1_ref, w2_ref, b2_ref, w3_ref, b3_ref, o_ref):
    # x_ref: (tb, IN) f32; w*: bf16 (pre-transposed [in, out]); b*: (1, out) f32
    # o_ref: (tb, OUT_FEATURES) f32
    x = x_ref[...].astype(jnp.bfloat16)

    # fc1 + relu (MXU bf16 operands -> f32 accumulate, elementwise in f32)
    h = jnp.dot(x, w1_ref[...], preferred_element_type=jnp.float32)
    h = jnp.maximum(h + b1_ref[...], 0.0)

    # fc2 + relu
    h = jnp.dot(h.astype(jnp.bfloat16), w2_ref[...],
                preferred_element_type=jnp.float32)
    h = jnp.maximum(h + b2_ref[...], 0.0)

    # fc3 on a lane-dense 128-wide register (output columns zero-padded)
    logits = jnp.dot(h.astype(jnp.bfloat16), w3_ref[...],
                     preferred_element_type=jnp.float32)
    logits = logits + b3_ref[...]

    # masked, numerically-stable log_softmax over the first OUT_FEATURES lanes
    lane = jax.lax.broadcasted_iota(jnp.int32, logits.shape, 1)
    valid = lane < OUT_FEATURES
    neg_big = jnp.float32(-1e30)
    m = jnp.max(jnp.where(valid, logits, neg_big), axis=1, keepdims=True)
    shifted = logits - m
    exp = jnp.where(valid, jnp.exp(shifted), 0.0)
    lse = jnp.log(jnp.sum(exp, axis=1, keepdims=True))

    # store only the valid lanes (narrow (tb, 4) output block)
    o_ref[...] = (shifted - lse)[:, :OUT_FEATURES].astype(o_ref.dtype)


def prepare_params(params):
    """One-time weight prep: bf16 MXU copies, fc3 zero-padded to 128 lanes."""
    w3p = jnp.pad(params["w3"], ((0, 0), (0, LOGIT_PAD - OUT_FEATURES)))
    b3p = jnp.pad(params["b3"], ((0, 0), (0, LOGIT_PAD - OUT_FEATURES)))
    return {
        "w1": params["w1"].astype(jnp.bfloat16),
        "b1": params["b1"].astype(jnp.float32),
        "w2": params["w2"].astype(jnp.bfloat16),
        "b2": params["b2"].astype(jnp.float32),
        "w3": w3p.astype(jnp.bfloat16),
        "b3": b3p.astype(jnp.float32),
    }


@functools.partial(jax.jit, static_argnames=("tb",))
def cool_model_forward(x, prepared, *, tb=None):
    """x: [B, IN_FEATURES] float32. prepared: output of prepare_params()."""
    B = x.shape[0]

    # Tile selection: big tiles to amortize per-step overhead, but cap at
    # ceil(B/2) so the grid has >= 2 steps (v7x megacore can use both TCs).
    if tb is None:
        tb = min(DEFAULT_TB, max(8, _round_up(pl.cdiv(B, 2), 8)))
    tb = max(8, _round_up(tb, 8))

    grid = (pl.cdiv(B, tb),)   # partial edge block allowed; OOB rows discarded

    w1, b1 = prepared["w1"], prepared["b1"]
    w2, b2 = prepared["w2"], prepared["b2"]
    w3, b3 = prepared["w3"], prepared["b3"]

    flops = 2 * B * (IN_FEATURES * H1 + H1 * H2 + H2 * LOGIT_PAD)
    bytes_accessed = (
        B * IN_FEATURES * 4                    # input stream (f32)
        + B * OUT_FEATURES * 4                 # narrow output stream (f32)
        + (IN_FEATURES * H1 + H1 * H2 + H2 * LOGIT_PAD) * 2   # bf16 weights
        + (H1 + H2 + LOGIT_PAD) * 4            # f32 biases
    )

    # v5e's default scoped VMEM is 16 MiB; large tiles need an explicit limit.
    vmem_limit = (28 * 1024 * 1024) if tb >= 1024 else None

    out = pl.pallas_call(
        mlp_kernel,
        out_shape=jax.ShapeDtypeStruct((B, OUT_FEATURES), jnp.float32),
        grid_spec=pltpu.PrefetchScalarGridSpec(
            num_scalar_prefetch=0,
            grid=grid,
            in_specs=[
                pl.BlockSpec((tb, IN_FEATURES), lambda i: (i, 0)),
                pl.BlockSpec((IN_FEATURES, H1), lambda i: (0, 0)),
                pl.BlockSpec((1, H1), lambda i: (0, 0)),
                pl.BlockSpec((H1, H2), lambda i: (0, 0)),
                pl.BlockSpec((1, H2), lambda i: (0, 0)),
                pl.BlockSpec((H2, LOGIT_PAD), lambda i: (0, 0)),
                pl.BlockSpec((1, LOGIT_PAD), lambda i: (0, 0)),
            ],
            out_specs=pl.BlockSpec((tb, OUT_FEATURES), lambda i: (i, 0)),
        ),
        compiler_params=pltpu.CompilerParams(
            dimension_semantics=("parallel",),
            vmem_limit_bytes=vmem_limit,
        ),
        cost_estimate=pl.CostEstimate(
            flops=flops,
            transcendentals=B * (LOGIT_PAD + 1),
            bytes_accessed=bytes_accessed,
        ),
    )(x, w1, b1, w2, b2, w3, b3)

    return out


def init_params(key):
    """Deterministic init mirroring nn.Linear default (uniform +/-1/sqrt(fan_in)).
    Weights stored transposed: [in, out]."""
    def linear(key, fan_in, fan_out):
        kw, kb = jax.random.split(key)
        bound = 1.0 / jnp.sqrt(fan_in)
        w = jax.random.uniform(kw, (fan_in, fan_out), jnp.float32, -bound, bound)
        b = jax.random.uniform(kb, (1, fan_out), jnp.float32, -bound, bound)
        return w, b

    k1, k2, k3 = jax.random.split(key, 3)
    w1, b1 = linear(k1, IN_FEATURES, H1)
    w2, b2 = linear(k2, H1, H2)
    w3, b3 = linear(k3, H2, OUT_FEATURES)
    return {"w1": w1, "b1": b1, "w2": w2, "b2": b2, "w3": w3, "b3": b3}


def reference_forward(x, p):
    """Mirrors the kernel's bf16-operand / f32-accumulate matmul policy."""
    h = jnp.dot(x.astype(jnp.bfloat16), p["w1"].astype(jnp.bfloat16),
                preferred_element_type=jnp.float32)
    h = jnp.maximum(h + p["b1"], 0.0)
    h = jnp.dot(h.astype(jnp.bfloat16), p["w2"].astype(jnp.bfloat16),
                preferred_element_type=jnp.float32)
    h = jnp.maximum(h + p["b2"], 0.0)
    logits = jnp.dot(h.astype(jnp.bfloat16), p["w3"].astype(jnp.bfloat16),
                     preferred_element_type=jnp.float32) + p["b3"]
    return jax.nn.log_softmax(logits, axis=1)


if __name__ == "__main__":
    key = jax.random.PRNGKey(0)
    kx, kp = jax.random.split(key)

    params = init_params(kp)
    prepared = prepare_params(params)

    # Small smoke test.
    B = 8
    x = jax.random.normal(kx, (B, IN_FEATURES), jnp.float32)
    out = jax.block_until_ready(cool_model_forward(x, prepared))
    ref = reference_forward(x, params)
    assert out.shape == (B, OUT_FEATURES)
    assert jnp.allclose(out, ref, atol=2e-3, rtol=2e-3), "mismatch vs reference"

    # Ragged batch (partial edge block, grid > 1, no jnp.pad copy).
    B2 = 1000
    x2 = jax.random.normal(kx, (B2, IN_FEATURES), jnp.float32)
    out2 = jax.block_until_ready(cool_model_forward(x2, prepared, tb=256))
    ref2 = reference_forward(x2, params)
    assert out2.shape == (B2, OUT_FEATURES)
    assert jnp.allclose(out2, ref2, atol=2e-3, rtol=2e-3), "mismatch (ragged)"

    # Default tile-selection path (grid split in two for v7x megacore).
    B3 = 512
    x3 = jax.random.normal(kx, (B3, IN_FEATURES), jnp.float32)
    out3 = jax.block_until_ready(cool_model_forward(x3, prepared))
    ref3 = reference_forward(x3, params)
    assert out3.shape == (B3, OUT_FEATURES)
    assert jnp.allclose(out3, ref3, atol=2e-3, rtol=2e-3), "mismatch (default tb)"

    print("KERNEL_OK")
</pallas_src>

<mosaic_0001>
module attributes {stable_mosaic.version = 11 : i64} {
  func.func @mlp_kernel(%arg0: i32, %arg1: memref<8x32xf32, #tpu.memory_space<vmem>>, %arg2: memref<32x128xbf16, #tpu.memory_space<vmem>>, %arg3: memref<1x128xf32, #tpu.memory_space<vmem>>, %arg4: memref<128x512xbf16, #tpu.memory_space<vmem>>, %arg5: memref<1x512xf32, #tpu.memory_space<vmem>>, %arg6: memref<512x128xbf16, #tpu.memory_space<vmem>>, %arg7: memref<1x128xf32, #tpu.memory_space<vmem>>, %arg8: memref<8x4xf32, #tpu.memory_space<vmem>>) attributes {dimension_semantics = [#tpu.dimension_semantics<parallel>], iteration_bounds = array<i64: 1>, scalar_prefetch = 0 : i64, scratch_operands = 0 : i64, tpu.core_type = #tpu.core_type<tc>, window_params = [{transform_indices = @transform_0, window_bounds = array<i64: 8, 32>}, {pipeline_mode = #tpu.pipeline_mode<synchronous>, transform_indices = @transform_1, window_bounds = array<i64: 32, 128>}, {pipeline_mode = #tpu.pipeline_mode<synchronous>, transform_indices = @transform_2, window_bounds = array<i64: 1, 128>}, {pipeline_mode = #tpu.pipeline_mode<synchronous>, transform_indices = @transform_3, window_bounds = array<i64: 128, 512>}, {pipeline_mode = #tpu.pipeline_mode<synchronous>, transform_indices = @transform_4, window_bounds = array<i64: 1, 512>}, {pipeline_mode = #tpu.pipeline_mode<synchronous>, transform_indices = @transform_5, window_bounds = array<i64: 512, 128>}, {pipeline_mode = #tpu.pipeline_mode<synchronous>, transform_indices = @transform_6, window_bounds = array<i64: 1, 128>}, {transform_indices = @transform_7, window_bounds = array<i64: 8, 4>}]} {
    %c0 = arith.constant 0 : index
    %c0_0 = arith.constant 0 : index
    %0 = vector.load %arg1[%c0, %c0_0] : memref<8x32xf32, #tpu.memory_space<vmem>>, vector<8x32xf32>
    %1 = arith.truncf %0 : vector<8x32xf32> to vector<8x32xbf16>
    %c0_1 = arith.constant 0 : index
    %c0_2 = arith.constant 0 : index
    %2 = vector.load %arg2[%c0_1, %c0_2] : memref<32x128xbf16, #tpu.memory_space<vmem>>, vector<32x128xbf16>
    %cst = arith.constant dense<0.000000e+00> : vector<8x128xf32>
    %3 = tpu.matmul %1, %2, %cst {dimension_numbers = #tpu.dot_dimension_numbers<[1], [0], [0], [1], [0, 0, 1, 1], [], []>} : vector<8x32xbf16>, vector<32x128xbf16>, vector<8x128xf32> -> vector<8x128xf32>
    %c0_3 = arith.constant 0 : index
    %c0_4 = arith.constant 0 : index
    %4 = vector.load %arg3[%c0_3, %c0_4] : memref<1x128xf32, #tpu.memory_space<vmem>>, vector<1x128xf32>
    %5 = vector.broadcast %4 : vector<1x128xf32> to vector<8x128xf32>
    %6 = arith.addf %3, %5 : vector<8x128xf32>
    %cst_5 = arith.constant 0.000000e+00 : f32
    %7 = vector.broadcast %cst_5 : f32 to vector<8x128xf32>
    %8 = arith.maximumf %6, %7 : vector<8x128xf32>
    %9 = arith.truncf %8 : vector<8x128xf32> to vector<8x128xbf16>
    %c0_6 = arith.constant 0 : index
    %c0_7 = arith.constant 0 : index
    %10 = vector.load %arg4[%c0_6, %c0_7] : memref<128x512xbf16, #tpu.memory_space<vmem>>, vector<128x512xbf16>
    %cst_8 = arith.constant dense<0.000000e+00> : vector<8x512xf32>
    %11 = tpu.matmul %9, %10, %cst_8 {dimension_numbers = #tpu.dot_dimension_numbers<[1], [0], [0], [1], [0, 0, 1, 1], [], []>} : vector<8x128xbf16>, vector<128x512xbf16>, vector<8x512xf32> -> vector<8x512xf32>
    %c0_9 = arith.constant 0 : index
    %c0_10 = arith.constant 0 : index
    %12 = vector.load %arg5[%c0_9, %c0_10] : memref<1x512xf32, #tpu.memory_space<vmem>>, vector<1x512xf32>
    %13 = vector.broadcast %12 : vector<1x512xf32> to vector<8x512xf32>
    %14 = arith.addf %11, %13 : vector<8x512xf32>
    %cst_11 = arith.constant 0.000000e+00 : f32
    %15 = vector.broadcast %cst_11 : f32 to vector<8x512xf32>
    %16 = arith.maximumf %14, %15 : vector<8x512xf32>
    %17 = arith.truncf %16 : vector<8x512xf32> to vector<8x512xbf16>
    %c0_12 = arith.constant 0 : index
    %c0_13 = arith.constant 0 : index
    %18 = vector.load %arg6[%c0_12, %c0_13] : memref<512x128xbf16, #tpu.memory_space<vmem>>, vector<512x128xbf16>
    %cst_14 = arith.constant dense<0.000000e+00> : vector<8x128xf32>
    %19 = tpu.matmul %17, %18, %cst_14 {dimension_numbers = #tpu.dot_dimension_numbers<[1], [0], [0], [1], [0, 0, 1, 1], [], []>} : vector<8x512xbf16>, vector<512x128xbf16>, vector<8x128xf32> -> vector<8x128xf32>
    %c0_15 = arith.constant 0 : index
    %c0_16 = arith.constant 0 : index
    %20 = vector.load %arg7[%c0_15, %c0_16] : memref<1x128xf32, #tpu.memory_space<vmem>>, vector<1x128xf32>
    %21 = vector.broadcast %20 : vector<1x128xf32> to vector<8x128xf32>
    %22 = arith.addf %19, %21 : vector<8x128xf32>
    %23 = tpu.iota {dimensions = array<i32: 1>} : vector<8x128xi32>
    %c4_i32 = arith.constant 4 : i32
    %24 = vector.broadcast %c4_i32 : i32 to vector<8x128xi32>
    %25 = arith.cmpi slt, %23, %24 : vector<8x128xi32>
    %cst_17 = arith.constant -1.000000e+30 : f32
    %26 = vector.broadcast %cst_17 : f32 to vector<8x128xf32>
    %27 = arith.select %25, %22, %26 : vector<8x128xi1>, vector<8x128xf32>
    %cst_18 = arith.constant dense<0xFF800000> : vector<8xf32>
    %28 = vector.multi_reduction <maximumf>, %27, %cst_18 [1] : vector<8x128xf32> to vector<8xf32>
    %29 = vector.shape_cast %28 : vector<8xf32> to vector<8x1xf32>
    %30 = vector.broadcast %29 : vector<8x1xf32> to vector<8x128xf32>
    %31 = arith.subf %22, %30 : vector<8x128xf32>
    %32 = math.exp %31 : vector<8x128xf32>
    %cst_19 = arith.constant 0.000000e+00 : f32
    %33 = vector.broadcast %cst_19 : f32 to vector<8x128xf32>
    %34 = arith.select %25, %32, %33 : vector<8x128xi1>, vector<8x128xf32>
    %cst_20 = arith.constant dense<0.000000e+00> : vector<8xf32>
    %35 = vector.multi_reduction <add>, %34, %cst_20 [1] : vector<8x128xf32> to vector<8xf32>
    %36 = vector.shape_cast %35 : vector<8xf32> to vector<8x1xf32>
    %37 = math.log %36 : vector<8x1xf32>
    %38 = vector.broadcast %37 : vector<8x1xf32> to vector<8x128xf32>
    %39 = arith.subf %31, %38 : vector<8x128xf32>
    %40 = vector.extract_strided_slice %39 {offsets = [0, 0], sizes = [8, 4], strides = [1, 1]} : vector<8x128xf32> to vector<8x4xf32>
    %c0_21 = arith.constant 0 : index
    %c0_22 = arith.constant 0 : index
    %41 = vector.load %arg8[%c0_21, %c0_22] : memref<8x4xf32, #tpu.memory_space<vmem>>, vector<8x4xf32>
    tpu.vector_store %arg8[%c0_21, %c0_22], %40 {strides = array<i32>} : memref<8x4xf32, #tpu.memory_space<vmem>>, vector<8x4xf32>,
    return
  }
  func.func @transform_0(%arg0: i32) -> (i32, i32) {
    %c0_i32 = arith.constant 0 : i32
    %c0_i32_0 = arith.constant 0 : i32
    return %arg0, %c0_i32 : i32, i32
  }
  func.func @transform_1(%arg0: i32) -> (i32, i32) {
    %c0_i32 = arith.constant 0 : i32
    %c0_i32_0 = arith.constant 0 : i32
    %c0_i32_1 = arith.constant 0 : i32
    return %c0_i32, %c0_i32_0 : i32, i32
  }
  func.func @transform_2(%arg0: i32) -> (i32, i32) {
    %c0_i32 = arith.constant 0 : i32
    %c0_i32_0 = arith.constant 0 : i32
    %c0_i32_1 = arith.constant 0 : i32
    return %c0_i32, %c0_i32_0 : i32, i32
  }
  func.func @transform_3(%arg0: i32) -> (i32, i32) {
    %c0_i32 = arith.constant 0 : i32
    %c0_i32_0 = arith.constant 0 : i32
    %c0_i32_1 = arith.constant 0 : i32
    return %c0_i32, %c0_i32_0 : i32, i32
  }
  func.func @transform_4(%arg0: i32) -> (i32, i32) {
    %c0_i32 = arith.constant 0 : i32
    %c0_i32_0 = arith.constant 0 : i32
    %c0_i32_1 = arith.constant 0 : i32
    return %c0_i32, %c0_i32_0 : i32, i32
  }
  func.func @transform_5(%arg0: i32) -> (i32, i32) {
    %c0_i32 = arith.constant 0 : i32
    %c0_i32_0 = arith.constant 0 : i32
    %c0_i32_1 = arith.constant 0 : i32
    return %c0_i32, %c0_i32_0 : i32, i32
  }
  func.func @transform_6(%arg0: i32) -> (i32, i32) {
    %c0_i32 = arith.constant 0 : i32
    %c0_i32_0 = arith.constant 0 : i32
    %c0_i32_1 = arith.constant 0 : i32
    return %c0_i32, %c0_i32_0 : i32, i32
  }
  func.func @transform_7(%arg0: i32) -> (i32, i32) {
    %c0_i32 = arith.constant 0 : i32
    %c0_i32_0 = arith.constant 0 : i32
    return %arg0, %c0_i32 : i32, i32
  }
}

</mosaic_0001>

<llo_original>
// kernel: cool_model_forward.1
$region0: #{cool_model_forward.1}
  #allocation0 [shape = 'u32[]', space=smem, size = 0x4, offset = 0x4, fixed_abs, tag = 'smem constant byte address 0x4 - core index']
  #allocation1 [shape = 'u32[144,128]{1,0:T(1,128)}', space=vmem, size = 0x12000, scoped, tag = 'internal scratch']
  %s0 = inlined_call_operand.hbm [shape: f32[8,32], index: 0, kind: input, shape index: {}]
  %s1 = inlined_call_operand.hbm [shape: bf16[32,128], index: 1, kind: input, shape index: {}]
  %s2 = inlined_call_operand.vmem [shape: f32[1,128], index: 2, kind: input, shape index: {}]
  %s3 = inlined_call_operand.hbm [shape: bf16[128,512], index: 3, kind: input, shape index: {}]
  %s4 = inlined_call_operand.vmem [shape: f32[1,512], index: 4, kind: input, shape index: {}]
  %s5 = inlined_call_operand.hbm [shape: bf16[512,128], index: 5, kind: input, shape index: {}]
  %s6 = inlined_call_operand.vmem [shape: f32[1,128], index: 6, kind: input, shape index: {}]
  %s7 = inlined_call_operand.vmem [shape: f32[8,4], index: 7, kind: output, shape index: {}]
  %s8 = sld [smem:[#allocation0]]
  $region54: #{cool_model_forward.1} parent=0
    _
  %s10 = ssub.s32 1, %s8
  %s11 = scalar_select 0, %s10, %s8
  $region1: #{cool_model_forward.1} parent=0
    #allocation2 [shape = 'u8[4096]{0}', space=vmem, size = 0x1000, scoped, tag = 'input window, operand 0, single buffered']
    #allocation3 [shape = 's32[1]{0}', space=sflag, size = 0x4, scoped, tag = 'scoped memory for cool_model_forward.1']
    #allocation4 [shape = 'u8[8192]{0}', space=vmem, size = 0x2000, scoped, tag = 'input window, operand 1, single buffered']
    #allocation5 [shape = 's32[1]{0}', space=sflag, size = 0x4, scoped, tag = 'scoped memory for cool_model_forward.1']
    #allocation6 [shape = 'u8[131072]{0}', space=vmem, size = 0x20000, scoped, tag = 'input window, operand 3, single buffered']
    #allocation7 [shape = 'u8[131072]{0}', space=vmem, size = 0x20000, scoped, tag = 'input window, operand 5, single buffered']
    #allocation8 [shape = 's32[1]{0}', space=sflag, size = 0x4, scoped, tag = 'scoped memory for cool_model_forward.1']
    %12 = vsyncpa [#allocation3], 0
    %13 = vsyncpa [#allocation5], 0
    %14 = vsyncpa [#allocation8], 0
    // Predicated region
    $region2: #{cool_model_forward.1} parent=1 // pred_check
      _
    $region3: #{cool_model_forward.1} parent=1 // pred_check_branch
      %16 = sbr.rel (0) target = $region5
    $region4: #{cool_model_forward.1} parent=1 // pred_region
      %s18 = ssub.s32 128, 128
      %19 = vsyncadd [#allocation3], %s18
      %s21 = sshll.u32 [#allocation2], 4
      %s22 = int_to_ptr.vmem [resolvable:$true] %s21
      %24 = dma.hbm_to_vmem [thread:$0]  %s0, 128, %s22, [#allocation3]
    $region5: #{cool_model_forward.1} parent=1 // pred_fallthru
      _
    // Predicated region
    $region6: #{cool_model_forward.1} parent=1 // pred_check
      _
    $region7: #{cool_model_forward.1} parent=1 // pred_check_branch
      %26 = sbr.rel (0) target = $region9
    $region8: #{cool_model_forward.1} parent=1 // pred_region
      %s28 = ssub.s32 256, 256
      %29 = vsyncadd [#allocation5], %s28
      %s30 = sshll.u32 [#allocation4], 4
      %s31 = int_to_ptr.vmem [resolvable:$true] %s30
      %36 = dma.hbm_to_vmem [thread:$0]  %s1, 256, %s31, [#allocation5], 64, 64, 4
    $region9: #{cool_model_forward.1} parent=1 // pred_fallthru
      _
    // Predicated region
    $region10: #{cool_model_forward.1} parent=1 // pred_check
      _
    $region11: #{cool_model_forward.1} parent=1 // pred_check_branch
      %38 = sbr.rel (0) target = $region13
    $region12: #{cool_model_forward.1} parent=1 // pred_region
      _
    $region13: #{cool_model_forward.1} parent=1 // pred_fallthru
      _
    // Predicated region
    $region14: #{cool_model_forward.1} parent=1 // pred_check
      _
    $region15: #{cool_model_forward.1} parent=1 // pred_check_branch
      %40 = sbr.rel (0) target = $region17
    $region16: #{cool_model_forward.1} parent=1 // pred_region
      %s42 = ssub.s32 4096, 4096
      %43 = vsyncadd [#allocation5], %s42
      %s44 = sshll.u32 [#allocation6], 4
      %s45 = int_to_ptr.vmem [resolvable:$true] %s44
      %50 = dma.hbm_to_vmem [thread:$0]  %s3, 4096, %s45, [#allocation5], 256, 256, 16
    $region17: #{cool_model_forward.1} parent=1 // pred_fallthru
      _
    // Predicated region
    $region18: #{cool_model_forward.1} parent=1 // pred_check
      _
    $region19: #{cool_model_forward.1} parent=1 // pred_check_branch
      %52 = sbr.rel (0) target = $region21
    $region20: #{cool_model_forward.1} parent=1 // pred_region
      _
    $region21: #{cool_model_forward.1} parent=1 // pred_fallthru
      _
    // Predicated region
    $region22: #{cool_model_forward.1} parent=1 // pred_check
      _
    $region23: #{cool_model_forward.1} parent=1 // pred_check_branch
      %54 = sbr.rel (0) target = $region25
    $region24: #{cool_model_forward.1} parent=1 // pred_region
      %s56 = ssub.s32 4096, 4096
      %57 = vsyncadd [#allocation8], %s56
      %s58 = sshll.u32 [#allocation7], 4
      %s59 = int_to_ptr.vmem [resolvable:$true] %s58
      %64 = dma.hbm_to_vmem [thread:$0]  %s5, 4096, %s59, [#allocation8], 64, 64, 4
    $region25: #{cool_model_forward.1} parent=1 // pred_fallthru
      _
    // Predicated region
    $region26: #{cool_model_forward.1} parent=1 // pred_check
      _
    $region27: #{cool_model_forward.1} parent=1 // pred_check_branch
      %66 = sbr.rel (0) target = $region29
    $region28: #{cool_model_forward.1} parent=1 // pred_region
      _
    $region29: #{cool_model_forward.1} parent=1 // pred_fallthru
      _
    // Predicated region
    $region30: #{cool_model_forward.1} parent=1 // pred_check
      _
    $region31: #{cool_model_forward.1} parent=1 // pred_check_branch
      %68 = sbr.rel (0) target = $region33
    $region32: #{cool_model_forward.1} parent=1 // pred_region
      %69 = dma.done [#allocation3], 128
    $region33: #{cool_model_forward.1} parent=1 // pred_fallthru
      _
    // Predicated region
    $region34: #{cool_model_forward.1} parent=1 // pred_check
      _
    $region35: #{cool_model_forward.1} parent=1 // pred_check_branch
      %71 = sbr.rel (0) target = $region37
    $region36: #{cool_model_forward.1} parent=1 // pred_region
      %72 = dma.done [#allocation5], 256
    $region37: #{cool_model_forward.1} parent=1 // pred_fallthru
      _
    // Predicated region
    $region38: #{cool_model_forward.1} parent=1 // pred_check
      _
    $region39: #{cool_model_forward.1} parent=1 // pred_check_branch
      %74 = sbr.rel (0) target = $region41
    $region40: #{cool_model_forward.1} parent=1 // pred_region
      %75 = dma.done [#allocation5], 4096
    $region41: #{cool_model_forward.1} parent=1 // pred_fallthru
      _
    // Predicated region
    $region42: #{cool_model_forward.1} parent=1 // pred_check
      _
    $region43: #{cool_model_forward.1} parent=1 // pred_check_branch
      %77 = sbr.rel (0) target = $region45
    $region44: #{cool_model_forward.1} parent=1 // pred_region
      %78 = dma.done [#allocation8], 4096
    $region45: #{cool_model_forward.1} parent=1 // pred_fallthru
      _
    %v80 = vld [vmem:[#allocation2] sm:$0xff]
    %v81 = vpack.c.bf16 %v80, %v80
    %v82 = vld [vmem:[#allocation4] sm:$0xf]
    %v83 = vld [vmem:[#allocation4 + $0x4] sm:$0xf]
    %v84 = vld [vmem:[#allocation4 + $0x8] sm:$0xf]
    %v85 = vld [vmem:[#allocation4 + $0xc] sm:$0xf]
    %v86 = vld [vmem:[%s2] sm:$0x1]
    %v88 = vlaneseq
    %v89 = vshrl.u32 %v88, 7
    %v90 = vsub.s32 0, %v89
    %v91 = vrot.slane %v86, %v90
    %v97 = vunpack.c.l.b16 %v82
    %v98 = vunpack.c.l.b16 %v83
    %v99 = vunpack.c.l.b16 %v84
    %v100 = vunpack.c.l.b16 %v85
    %v101 = vpack.c.b16 %v98, %v97
    %v102 = vpack.c.b16 %v100, %v99
    %vm105 = vcmask 261120
    %v107 = vsel %vm105, %v81, 0
    %109 = vmatprep.subr.bf16.mxu0 0
    %110 = vmatpush1.bf16.msra.mxu0 %v101
    %111 = vmatprep.subr.bf16.mxu0 0
    %112 = vmatpush1.bf16.msra.mxu0 %v102
    %113 = vmatprep.subr.bf16.mxu0 0
    %114 = vmatpush1.bf16.msra.mxu0 0
    %115 = vmatprep.subr.bf16.mxu0 0
    %116 = vmatpush1.bf16.msra.mxu0 0
    %117 = vmatprep.subr.bf16.mxu0 0
    %118 = vmatpush1.bf16.msra.mxu0 0
    %119 = vmatprep.subr.bf16.mxu0 0
    %120 = vmatpush1.bf16.msra.mxu0 0
    %121 = vmatprep.subr.bf16.mxu0 0
    %122 = vmatpush1.bf16.msra.mxu0 0
    %123 = vmatprep.subr.bf16.mxu0 0
    %124 = vmatpush1.bf16.msra.mxu0 0
    %125 = vmatprep.subr.bf16.mxu0 0
    %126 = vmatpush1.bf16.msra.mxu0 0
    %127 = vmatprep.subr.bf16.mxu0 0
    %128 = vmatpush1.bf16.msra.mxu0 0
    %129 = vmatprep.subr.bf16.mxu0 0
    %130 = vmatpush1.bf16.msra.mxu0 0
    %131 = vmatprep.subr.bf16.mxu0 0
    %132 = vmatpush1.bf16.msra.mxu0 0
    %133 = vmatprep.subr.bf16.mxu0 0
    %134 = vmatpush1.bf16.msra.mxu0 0
    %135 = vmatprep.subr.bf16.mxu0 0
    %136 = vmatpush1.bf16.msra.mxu0 0
    %137 = vmatprep.subr.bf16.mxu0 0
    %138 = vmatpush1.bf16.msra.mxu0 0
    %139 = vmatprep.subr.bf16.mxu0 0
    %140 = vmatpush1.bf16.msra.mxu0 0
    %141 = vmatprep.mubr.bf16.mxu0 0
    %142 = vmatmul.mubr.bf16.gmra.mrb[0].mxu0 %v107
    %v143 = vpop.f32.mrb[0].mxu0
    %v144 = vadd.f32 %v91, %v143
    %v145 = vpop.f32.mrb[0].mxu0
    %v146 = vpop.f32.mrb[0].mxu0
    %v147 = vpop.f32.mrb[0].mxu0
    %148 = vdwg.mxu0
    %v149 = vmax.f32 %v144, 0.0
    %v150 = vpack.c.bf16 %v149, %v149
    %v151 = vld [vmem:[#allocation6] sm:$0xff]
    %v152 = vld [vmem:[#allocation6 + $0x8] sm:$0xff]
    %v153 = vld [vmem:[#allocation6 + $0x10] sm:$0xff]
    %v154 = vld [vmem:[#allocation6 + $0x18] sm:$0xff]
    %v155 = vld [vmem:[#allocation6 + $0x20] sm:$0xff]
    %v156 = vld [vmem:[#allocation6 + $0x28] sm:$0xff]
    %v157 = vld [vmem:[#allocation6 + $0x30] sm:$0xff]
    %v158 = vld [vmem:[#allocation6 + $0x38] sm:$0xff]
    %v159 = vld [vmem:[#allocation6 + $0x40] sm:$0xff]
    %v160 = vld [vmem:[#allocation6 + $0x48] sm:$0xff]
    %v161 = vld [vmem:[#allocation6 + $0x50] sm:$0xff]
    %v162 = vld [vmem:[#allocation6 + $0x58] sm:$0xff]
    %v163 = vld [vmem:[#allocation6 + $0x60] sm:$0xff]
    %v164 = vld [vmem:[#allocation6 + $0x68] sm:$0xff]
    %v165 = vld [vmem:[#allocation6 + $0x70] sm:$0xff]
    %v166 = vld [vmem:[#allocation6 + $0x78] sm:$0xff]
    %v167 = vld [vmem:[#allocation6 + $0x80] sm:$0xff]
    %v168 = vld [vmem:[#allocation6 + $0x88] sm:$0xff]
    %v169 = vld [vmem:[#allocation6 + $0x90] sm:$0xff]
    %v170 = vld [vmem:[#allocation6 + $0x98] sm:$0xff]
    %v171 = vld [vmem:[#allocation6 + $0xa0] sm:$0xff]
    %v172 = vld [vmem:[#allocation6 + $0xa8] sm:$0xff]
    %v173 = vld [vmem:[#allocation6 + $0xb0] sm:$0xff]
    %v174 = vld [vmem:[#allocation6 + $0xb8] sm:$0xff]
    %v175 = vld [vmem:[#allocation6 + $0xc0] sm:$0xff]
    %v176 = vld [vmem:[#allocation6 + $0xc8] sm:$0xff]
    %v177 = vld [vmem:[#allocation6 + $0xd0] sm:$0xff]
    %v178 = vld [vmem:[#allocation6 + $0xd8] sm:$0xff]
    %v179 = vld [vmem:[#allocation6 + $0xe0] sm:$0xff]
    %v180 = vld [vmem:[#allocation6 + $0xe8] sm:$0xff]
    %v181 = vld [vmem:[#allocation6 + $0xf0] sm:$0xff]
    %v182 = vld [vmem:[#allocation6 + $0xf8] sm:$0xff]
    %v183 = vld [vmem:[%s4] sm:$0xf]
    %v185 = vlaneseq
    %v186 = vshrl.u32 %v185, 7
    %v187 = vsub.s32 0, %v186
    %v188 = vrot.slane %v183, %v187
    %v189 = vlaneseq
    %v190 = vshrl.u32 %v189, 7
    %v191 = vsub.s32 1, %v190
    %v192 = vrot.slane %v183, %v191
    %v193 = vlaneseq
    %v194 = vshrl.u32 %v193, 7
    %v195 = vsub.s32 2, %v194
    %v196 = vrot.slane %v183, %v195
    %v197 = vlaneseq
    %v198 = vshrl.u32 %v197, 7
    %v199 = vsub.s32 3, %v198
    %v200 = vrot.slane %v183, %v199
    %v237 = vunpack.c.l.b16 %v151
    %v238 = vunpack.c.h.b16 %v151
    %v239 = vunpack.c.l.b16 %v152
    %v240 = vunpack.c.h.b16 %v152
    %v241 = vunpack.c.l.b16 %v153
    %v242 = vunpack.c.h.b16 %v153
    %v243 = vunpack.c.l.b16 %v154
    %v244 = vunpack.c.h.b16 %v154
    %v245 = vunpack.c.l.b16 %v155
    %v246 = vunpack.c.h.b16 %v155
    %v247 = vunpack.c.l.b16 %v156
    %v248 = vunpack.c.h.b16 %v156
    %v249 = vunpack.c.l.b16 %v157
    %v250 = vunpack.c.h.b16 %v157
    %v251 = vunpack.c.l.b16 %v158
    %v252 = vunpack.c.h.b16 %v158
    %v253 = vunpack.c.l.b16 %v159
    %v254 = vunpack.c.h.b16 %v159
    %v255 = vunpack.c.l.b16 %v160
    %v256 = vunpack.c.h.b16 %v160
    %v257 = vunpack.c.l.b16 %v161
    %v258 = vunpack.c.h.b16 %v161
    %v259 = vunpack.c.l.b16 %v162
    %v260 = vunpack.c.h.b16 %v162
    %v261 = vunpack.c.l.b16 %v163
    %v262 = vunpack.c.h.b16 %v163
    %v263 = vunpack.c.l.b16 %v164
    %v264 = vunpack.c.h.b16 %v164
    %v265 = vunpack.c.l.b16 %v165
    %v266 = vunpack.c.h.b16 %v165
    %v267 = vunpack.c.l.b16 %v166
    %v268 = vunpack.c.h.b16 %v166
    %v269 = vunpack.c.l.b16 %v167
    %v270 = vunpack.c.h.b16 %v167
    %v271 = vunpack.c.l.b16 %v168
    %v272 = vunpack.c.h.b16 %v168
    %v273 = vunpack.c.l.b16 %v169
    %v274 = vunpack.c.h.b16 %v169
    %v275 = vunpack.c.l.b16 %v170
    %v276 = vunpack.c.h.b16 %v170
    %v277 = vunpack.c.l.b16 %v171
    %v278 = vunpack.c.h.b16 %v171
    %v279 = vunpack.c.l.b16 %v172
    %v280 = vunpack.c.h.b16 %v172
    %v281 = vunpack.c.l.b16 %v173
    %v282 = vunpack.c.h.b16 %v173
    %v283 = vunpack.c.l.b16 %v174
    %v284 = vunpack.c.h.b16 %v174
    %v285 = vunpack.c.l.b16 %v175
    %v286 = vunpack.c.h.b16 %v175
    %v287 = vunpack.c.l.b16 %v176
    %v288 = vunpack.c.h.b16 %v176
    %v289 = vunpack.c.l.b16 %v177
    %v290 = vunpack.c.h.b16 %v177
    %v291 = vunpack.c.l.b16 %v178
    %v292 = vunpack.c.h.b16 %v178
    %v293 = vunpack.c.l.b16 %v179
    %v294 = vunpack.c.h.b16 %v179
    %v295 = vunpack.c.l.b16 %v180
    %v296 = vunpack.c.h.b16 %v180
    %v297 = vunpack.c.l.b16 %v181
    %v298 = vunpack.c.h.b16 %v181
    %v299 = vunpack.c.l.b16 %v182
    %v300 = vunpack.c.h.b16 %v182
    %v301 = vpack.c.b16 %v241, %v237
    %v302 = vpack.c.b16 %v242, %v238
    %v303 = vpack.c.b16 %v243, %v239
    %v304 = vpack.c.b16 %v244, %v240
    %v305 = vpack.c.b16 %v249, %v245
    %v306 = vpack.c.b16 %v250, %v246
    %v307 = vpack.c.b16 %v251, %v247
    %v308 = vpack.c.b16 %v252, %v248
    %v309 = vpack.c.b16 %v257, %v253
    %v310 = vpack.c.b16 %v258, %v254
    %v311 = vpack.c.b16 %v259, %v255
    %v312 = vpack.c.b16 %v260, %v256
    %v313 = vpack.c.b16 %v265, %v261
    %v314 = vpack.c.b16 %v266, %v262
    %v315 = vpack.c.b16 %v267, %v263
    %v316 = vpack.c.b16 %v268, %v264
    %v317 = vpack.c.b16 %v273, %v269
    %v318 = vpack.c.b16 %v274, %v270
    %v319 = vpack.c.b16 %v275, %v271
    %v320 = vpack.c.b16 %v276, %v272
    %v321 = vpack.c.b16 %v281, %v277
    %v322 = vpack.c.b16 %v282, %v278
    %v323 = vpack.c.b16 %v283, %v279
    %v324 = vpack.c.b16 %v284, %v280
    %v325 = vpack.c.b16 %v289, %v285
    %v326 = vpack.c.b16 %v290, %v286
    %v327 = vpack.c.b16 %v291, %v287
    %v328 = vpack.c.b16 %v292, %v288
    %v329 = vpack.c.b16 %v297, %v293
    %v330 = vpack.c.b16 %v298, %v294
    %v331 = vpack.c.b16 %v299, %v295
    %v332 = vpack.c.b16 %v300, %v296
    %365 = vmatprep.subr.bf16.mxu0 %v302
    %366 = vmatpush1.bf16.msra.mxu0 %v301
    %367 = vmatprep.subr.bf16.mxu0 %v306
    %368 = vmatpush1.bf16.msra.mxu0 %v305
    %369 = vmatprep.subr.bf16.mxu0 %v310
    %370 = vmatpush1.bf16.msra.mxu0 %v309
    %371 = vmatprep.subr.bf16.mxu0 %v314
    %372 = vmatpush1.bf16.msra.mxu0 %v313
    %373 = vmatprep.subr.bf16.mxu0 %v318
    %374 = vmatpush1.bf16.msra.mxu0 %v317
    %375 = vmatprep.subr.bf16.mxu0 %v322
    %376 = vmatpush1.bf16.msra.mxu0 %v321
    %377 = vmatprep.subr.bf16.mxu0 %v326
    %378 = vmatpush1.bf16.msra.mxu0 %v325
    %379 = vmatprep.subr.bf16.mxu0 %v330
    %380 = vmatpush1.bf16.msra.mxu0 %v329
    %381 = vmatprep.subr.bf16.mxu0 0
    %382 = vmatpush1.bf16.msra.mxu0 0
    %383 = vmatprep.subr.bf16.mxu0 0
    %384 = vmatpush1.bf16.msra.mxu0 0
    %385 = vmatprep.subr.bf16.mxu0 0
    %386 = vmatpush1.bf16.msra.mxu0 0
    %387 = vmatprep.subr.bf16.mxu0 0
    %388 = vmatpush1.bf16.msra.mxu0 0
    %389 = vmatprep.subr.bf16.mxu0 0
    %390 = vmatpush1.bf16.msra.mxu0 0
    %391 = vmatprep.subr.bf16.mxu0 0
    %392 = vmatpush1.bf16.msra.mxu0 0
    %393 = vmatprep.subr.bf16.mxu0 0
    %394 = vmatpush1.bf16.msra.mxu0 0
    %395 = vmatprep.subr.bf16.mxu0 0
    %396 = vmatpush1.bf16.msra.mxu0 0
    %397 = vmatprep.mubr.bf16.mxu0 0
    %398 = vmatmul.mubr.bf16.gmra.mrb[0].mxu0 %v150
    %v399 = vpop.f32.mrb[0].mxu0
    %v400 = vadd.f32 %v188, %v399
    %v401 = vpop.f32.mrb[0].mxu0
    %v402 = vadd.f32 %v192, %v401
    %v403 = vpop.f32.mrb[0].mxu0
    %v404 = vpop.f32.mrb[0].mxu0
    %405 = vdwg.mxu0
    %406 = vmatprep.subr.bf16.mxu0 %v304
    %407 = vmatpush1.bf16.msra.mxu0 %v303
    %408 = vmatprep.subr.bf16.mxu0 %v308
    %409 = vmatpush1.bf16.msra.mxu0 %v307
    %410 = vmatprep.subr.bf16.mxu0 %v312
    %411 = vmatpush1.bf16.msra.mxu0 %v311
    %412 = vmatprep.subr.bf16.mxu0 %v316
    %413 = vmatpush1.bf16.msra.mxu0 %v315
    %414 = vmatprep.subr.bf16.mxu0 %v320
    %415 = vmatpush1.bf16.msra.mxu0 %v319
    %416 = vmatprep.subr.bf16.mxu0 %v324
    %417 = vmatpush1.bf16.msra.mxu0 %v323
    %418 = vmatprep.subr.bf16.mxu0 %v328
    %419 = vmatpush1.bf16.msra.mxu0 %v327
    %420 = vmatprep.subr.bf16.mxu0 %v332
    %421 = vmatpush1.bf16.msra.mxu0 %v331
    %422 = vmatprep.subr.bf16.mxu0 0
    %423 = vmatpush1.bf16.msra.mxu0 0
    %424 = vmatprep.subr.bf16.mxu0 0
    %425 = vmatpush1.bf16.msra.mxu0 0
    %426 = vmatprep.subr.bf16.mxu0 0
    %427 = vmatpush1.bf16.msra.mxu0 0
    %428 = vmatprep.subr.bf16.mxu0 0
    %429 = vmatpush1.bf16.msra.mxu0 0
    %430 = vmatprep.subr.bf16.mxu0 0
    %431 = vmatpush1.bf16.msra.mxu0 0
    %432 = vmatprep.subr.bf16.mxu0 0
    %433 = vmatpush1.bf16.msra.mxu0 0
    %434 = vmatprep.subr.bf16.mxu0 0
    %435 = vmatpush1.bf16.msra.mxu0 0
    %436 = vmatprep.subr.bf16.mxu0 0
    %437 = vmatpush1.bf16.msra.mxu0 0
    %438 = vmatprep.mubr.bf16.mxu0 0
    %439 = vmatmul.mubr.bf16.gmra.mrb[0].mxu0 %v150
    %v440 = vpop.f32.mrb[0].mxu0
    %v441 = vadd.f32 %v196, %v440
    %v442 = vpop.f32.mrb[0].mxu0
    %v443 = vadd.f32 %v200, %v442
    %v444 = vpop.f32.mrb[0].mxu0
    %v445 = vpop.f32.mrb[0].mxu0
    %446 = vdwg.mxu0
    %v447 = vmax.f32 %v400, 0.0
    %v448 = vmax.f32 %v402, 0.0
    %v449 = vmax.f32 %v441, 0.0
    %v450 = vmax.f32 %v443, 0.0
    %v451 = vpack.c.bf16 %v447, %v447
    %v452 = vpack.c.bf16 %v448, %v448
    %v453 = vpack.c.bf16 %v449, %v449
    %v454 = vpack.c.bf16 %v450, %v450
    %v455 = vld [vmem:[#allocation7] sm:$0xf]
    %v456 = vld [vmem:[#allocation7 + $0x4] sm:$0xf]
    %v457 = vld [vmem:[#allocation7 + $0x8] sm:$0xf]
    %v458 = vld [vmem:[#allocation7 + $0xc] sm:$0xf]
    %v459 = vld [vmem:[#allocation7 + $0x10] sm:$0xf]
    %v460 = vld [vmem:[#allocation7 + $0x14] sm:$0xf]
    %v461 = vld [vmem:[#allocation7 + $0x18] sm:$0xf]
    %v462 = vld [vmem:[#allocation7 + $0x1c] sm:$0xf]
    %v463 = vld [vmem:[#allocation7 + $0x20] sm:$0xf]
    %v464 = vld [vmem:[#allocation7 + $0x24] sm:$0xf]
    %v465 = vld [vmem:[#allocation7 + $0x28] sm:$0xf]
    %v466 = vld [vmem:[#allocation7 + $0x2c] sm:$0xf]
    %v467 = vld [vmem:[#allocation7 + $0x30] sm:$0xf]
    %v468 = vld [vmem:[#allocation7 + $0x34] sm:$0xf]
    %v469 = vld [vmem:[#allocation7 + $0x38] sm:$0xf]
    %v470 = vld [vmem:[#allocation7 + $0x3c] sm:$0xf]
    %v471 = vld [vmem:[#allocation7 + $0x40] sm:$0xf]
    %v472 = vld [vmem:[#allocation7 + $0x44] sm:$0xf]
    %v473 = vld [vmem:[#allocation7 + $0x48] sm:$0xf]
    %v474 = vld [vmem:[#allocation7 + $0x4c] sm:$0xf]
    %v475 = vld [vmem:[#allocation7 + $0x50] sm:$0xf]
    %v476 = vld [vmem:[#allocation7 + $0x54] sm:$0xf]
    %v477 = vld [vmem:[#allocation7 + $0x58] sm:$0xf]
    %v478 = vld [vmem:[#allocation7 + $0x5c] sm:$0xf]
    %v479 = vld [vmem:[#allocation7 + $0x60] sm:$0xf]
    %v480 = vld [vmem:[#allocation7 + $0x64] sm:$0xf]
    %v481 = vld [vmem:[#allocation7 + $0x68] sm:$0xf]
    %v482 = vld [vmem:[#allocation7 + $0x6c] sm:$0xf]
    %v483 = vld [vmem:[#allocation7 + $0x70] sm:$0xf]
    %v484 = vld [vmem:[#allocation7 + $0x74] sm:$0xf]
    %v485 = vld [vmem:[#allocation7 + $0x78] sm:$0xf]
    %v486 = vld [vmem:[#allocation7 + $0x7c] sm:$0xf]
    %v487 = vld [vmem:[#allocation7 + $0x80] sm:$0xf]
    %v488 = vld [vmem:[#allocation7 + $0x84] sm:$0xf]
    %v489 = vld [vmem:[#allocation7 + $0x88] sm:$0xf]
    %v490 = vld [vmem:[#allocation7 + $0x8c] sm:$0xf]
    %v491 = vld [vmem:[#allocation7 + $0x90] sm:$0xf]
    %v492 = vld [vmem:[#allocation7 + $0x94] sm:$0xf]
    %v493 = vld [vmem:[#allocation7 + $0x98] sm:$0xf]
    %v494 = vld [vmem:[#allocation7 + $0x9c] sm:$0xf]
    %v495 = vld [vmem:[#allocation7 + $0xa0] sm:$0xf]
    %v496 = vld [vmem:[#allocation7 + $0xa4] sm:$0xf]
    %v497 = vld [vmem:[#allocation7 + $0xa8] sm:$0xf]
    %v498 = vld [vmem:[#allocation7 + $0xac] sm:$0xf]
    %v499 = vld [vmem:[#allocation7 + $0xb0] sm:$0xf]
    %v500 = vld [vmem:[#allocation7 + $0xb4] sm:$0xf]
    %v501 = vld [vmem:[#allocation7 + $0xb8] sm:$0xf]
    %v502 = vld [vmem:[#allocation7 + $0xbc] sm:$0xf]
    %v503 = vld [vmem:[#allocation7 + $0xc0] sm:$0xf]
    %v504 = vld [vmem:[#allocation7 + $0xc4] sm:$0xf]
    %v505 = vld [vmem:[#allocation7 + $0xc8] sm:$0xf]
    %v506 = vld [vmem:[#allocation7 + $0xcc] sm:$0xf]
    %v507 = vld [vmem:[#allocation7 + $0xd0] sm:$0xf]
    %v508 = vld [vmem:[#allocation7 + $0xd4] sm:$0xf]
    %v509 = vld [vmem:[#allocation7 + $0xd8] sm:$0xf]
    %v510 = vld [vmem:[#allocation7 + $0xdc] sm:$0xf]
    %v511 = vld [vmem:[#allocation7 + $0xe0] sm:$0xf]
    %v512 = vld [vmem:[#allocation7 + $0xe4] sm:$0xf]
    %v513 = vld [vmem:[#allocation7 + $0xe8] sm:$0xf]
    %v514 = vld [vmem:[#allocation7 + $0xec] sm:$0xf]
    %v515 = vld [vmem:[#allocation7 + $0xf0] sm:$0xf]
    %v516 = vld [vmem:[#allocation7 + $0xf4] sm:$0xf]
    %v517 = vld [vmem:[#allocation7 + $0xf8] sm:$0xf]
    %v518 = vld [vmem:[#allocation7 + $0xfc] sm:$0xf]
    %v519 = vld [vmem:[%s6] sm:$0x1]
    %v521 = vlaneseq
    %v522 = vshrl.u32 %v521, 7
    %v523 = vsub.s32 0, %v522
    %v524 = vrot.slane %v519, %v523
    %v590 = vunpack.c.l.b16 %v455
    %v591 = vunpack.c.l.b16 %v456
    %v592 = vunpack.c.l.b16 %v457
    %v593 = vunpack.c.l.b16 %v458
    %v594 = vunpack.c.l.b16 %v459
    %v595 = vunpack.c.l.b16 %v460
    %v596 = vunpack.c.l.b16 %v461
    %v597 = vunpack.c.l.b16 %v462
    %v598 = vunpack.c.l.b16 %v463
    %v599 = vunpack.c.l.b16 %v464
    %v600 = vunpack.c.l.b16 %v465
    %v601 = vunpack.c.l.b16 %v466
    %v602 = vunpack.c.l.b16 %v467
    %v603 = vunpack.c.l.b16 %v468
    %v604 = vunpack.c.l.b16 %v469
    %v605 = vunpack.c.l.b16 %v470
    %v606 = vunpack.c.l.b16 %v471
    %v607 = vunpack.c.l.b16 %v472
    %v608 = vunpack.c.l.b16 %v473
    %v609 = vunpack.c.l.b16 %v474
    %v610 = vunpack.c.l.b16 %v475
    %v611 = vunpack.c.l.b16 %v476
    %v612 = vunpack.c.l.b16 %v477
    %v613 = vunpack.c.l.b16 %v478
    %v614 = vunpack.c.l.b16 %v479
    %v615 = vunpack.c.l.b16 %v480
    %v616 = vunpack.c.l.b16 %v481
    %v617 = vunpack.c.l.b16 %v482
    %v618 = vunpack.c.l.b16 %v483
    %v619 = vunpack.c.l.b16 %v484
    %v620 = vunpack.c.l.b16 %v485
    %v621 = vunpack.c.l.b16 %v486
    %v622 = vunpack.c.l.b16 %v487
    %v623 = vunpack.c.l.b16 %v488
    %v624 = vunpack.c.l.b16 %v489
    %v625 = vunpack.c.l.b16 %v490
    %v626 = vunpack.c.l.b16 %v491
    %v627 = vunpack.c.l.b16 %v492
    %v628 = vunpack.c.l.b16 %v493
    %v629 = vunpack.c.l.b16 %v494
    %v630 = vunpack.c.l.b16 %v495
    %v631 = vunpack.c.l.b16 %v496
    %v632 = vunpack.c.l.b16 %v497
    %v633 = vunpack.c.l.b16 %v498
    %v634 = vunpack.c.l.b16 %v499
    %v635 = vunpack.c.l.b16 %v500
    %v636 = vunpack.c.l.b16 %v501
    %v637 = vunpack.c.l.b16 %v502
    %v638 = vunpack.c.l.b16 %v503
    %v639 = vunpack.c.l.b16 %v504
    %v640 = vunpack.c.l.b16 %v505
    %v641 = vunpack.c.l.b16 %v506
    %v642 = vunpack.c.l.b16 %v507
    %v643 = vunpack.c.l.b16 %v508
    %v644 = vunpack.c.l.b16 %v509
    %v645 = vunpack.c.l.b16 %v510
    %v646 = vunpack.c.l.b16 %v511
    %v647 = vunpack.c.l.b16 %v512
    %v648 = vunpack.c.l.b16 %v513
    %v649 = vunpack.c.l.b16 %v514
    %v650 = vunpack.c.l.b16 %v515
    %v651 = vunpack.c.l.b16 %v516
    %v652 = vunpack.c.l.b16 %v517
    %v653 = vunpack.c.l.b16 %v518
    %v654 = vpack.c.b16 %v591, %v590
    %v655 = vpack.c.b16 %v593, %v592
    %v656 = vpack.c.b16 %v595, %v594
    %v657 = vpack.c.b16 %v597, %v596
    %v658 = vpack.c.b16 %v599, %v598
    %v659 = vpack.c.b16 %v601, %v600
    %v660 = vpack.c.b16 %v603, %v602
    %v661 = vpack.c.b16 %v605, %v604
    %v662 = vpack.c.b16 %v607, %v606
    %v663 = vpack.c.b16 %v609, %v608
    %v664 = vpack.c.b16 %v611, %v610
    %v665 = vpack.c.b16 %v613, %v612
    %v666 = vpack.c.b16 %v615, %v614
    %v667 = vpack.c.b16 %v617, %v616
    %v668 = vpack.c.b16 %v619, %v618
    %v669 = vpack.c.b16 %v621, %v620
    %v670 = vpack.c.b16 %v623, %v622
    %v671 = vpack.c.b16 %v625, %v624
    %v672 = vpack.c.b16 %v627, %v626
    %v673 = vpack.c.b16 %v629, %v628
    %v674 = vpack.c.b16 %v631, %v630
    %v675 = vpack.c.b16 %v633, %v632
    %v676 = vpack.c.b16 %v635, %v634
    %v677 = vpack.c.b16 %v637, %v636
    %v678 = vpack.c.b16 %v639, %v638
    %v679 = vpack.c.b16 %v641, %v640
    %v680 = vpack.c.b16 %v643, %v642
    %v681 = vpack.c.b16 %v645, %v644
    %v682 = vpack.c.b16 %v647, %v646
    %v683 = vpack.c.b16 %v649, %v648
    %v684 = vpack.c.b16 %v651, %v650
    %v685 = vpack.c.b16 %v653, %v652
    %718 = vmatprep.subr.bf16.mxu0 0
    %719 = vmatpush1.bf16.msra.mxu0 %v654
    %720 = vmatprep.subr.bf16.mxu0 0
    %721 = vmatpush1.bf16.msra.mxu0 %v655
    %722 = vmatprep.subr.bf16.mxu0 0
    %723 = vmatpush1.bf16.msra.mxu0 %v656
    %724 = vmatprep.subr.bf16.mxu0 0
    %725 = vmatpush1.bf16.msra.mxu0 %v657
    %726 = vmatprep.subr.bf16.mxu0 0
    %727 = vmatpush1.bf16.msra.mxu0 %v658
    %728 = vmatprep.subr.bf16.mxu0 0
    %729 = vmatpush1.bf16.msra.mxu0 %v659
    %730 = vmatprep.subr.bf16.mxu0 0
    %731 = vmatpush1.bf16.msra.mxu0 %v660
    %732 = vmatprep.subr.bf16.mxu0 0
    %733 = vmatpush1.bf16.msra.mxu0 %v661
    %734 = vmatprep.subr.bf16.mxu0 0
    %735 = vmatpush1.bf16.msra.mxu0 %v662
    %736 = vmatprep.subr.bf16.mxu0 0
    %737 = vmatpush1.bf16.msra.mxu0 %v663
    %738 = vmatprep.subr.bf16.mxu0 0
    %739 = vmatpush1.bf16.msra.mxu0 %v664
    %740 = vmatprep.subr.bf16.mxu0 0
    %741 = vmatpush1.bf16.msra.mxu0 %v665
    %742 = vmatprep.subr.bf16.mxu0 0
    %743 = vmatpush1.bf16.msra.mxu0 %v666
    %744 = vmatprep.subr.bf16.mxu0 0
    %745 = vmatpush1.bf16.msra.mxu0 %v667
    %746 = vmatprep.subr.bf16.mxu0 0
    %747 = vmatpush1.bf16.msra.mxu0 %v668
    %748 = vmatprep.subr.bf16.mxu0 0
    %749 = vmatpush1.bf16.msra.mxu0 %v669
    %750 = vmatprep.mubr.bf16.mxu0 %v452
    %751 = vmatmul.mubr.bf16.gmra.mrb[0].mxu0 %v451
    %v752 = vpop.f32.mrb[0].mxu0
    %v753 = vadd.f32 %v524, %v752
    %v754 = vpop.f32.mrb[0].mxu0
    %v755 = vpop.f32.mrb[0].mxu0
    %v756 = vpop.f32.mrb[0].mxu0
    %757 = vdwg.mxu0
    %758 = vmatprep.subr.bf16.mxu0 0
    %759 = vmatpush1.bf16.msra.mxu0 %v670
    %760 = vmatprep.subr.bf16.mxu0 0
    %761 = vmatpush1.bf16.msra.mxu0 %v671
    %762 = vmatprep.subr.bf16.mxu0 0
    %763 = vmatpush1.bf16.msra.mxu0 %v672
    %764 = vmatprep.subr.bf16.mxu0 0
    %765 = vmatpush1.bf16.msra.mxu0 %v673
    %766 = vmatprep.subr.bf16.mxu0 0
    %767 = vmatpush1.bf16.msra.mxu0 %v674
    %768 = vmatprep.subr.bf16.mxu0 0
    %769 = vmatpush1.bf16.msra.mxu0 %v675
    %770 = vmatprep.subr.bf16.mxu0 0
    %771 = vmatpush1.bf16.msra.mxu0 %v676
    %772 = vmatprep.subr.bf16.mxu0 0
    %773 = vmatpush1.bf16.msra.mxu0 %v677
    %774 = vmatprep.subr.bf16.mxu0 0
    %775 = vmatpush1.bf16.msra.mxu0 %v678
    %776 = vmatprep.subr.bf16.mxu0 0
    %777 = vmatpush1.bf16.msra.mxu0 %v679
    %778 = vmatprep.subr.bf16.mxu0 0
    %779 = vmatpush1.bf16.msra.mxu0 %v680
    %780 = vmatprep.subr.bf16.mxu0 0
    %781 = vmatpush1.bf16.msra.mxu0 %v681
    %782 = vmatprep.subr.bf16.mxu0 0
    %783 = vmatpush1.bf16.msra.mxu0 %v682
    %784 = vmatprep.subr.bf16.mxu0 0
    %785 = vmatpush1.bf16.msra.mxu0 %v683
    %786 = vmatprep.subr.bf16.mxu0 0
    %787 = vmatpush1.bf16.msra.mxu0 %v684
    %788 = vmatprep.subr.bf16.mxu0 0
    %789 = vmatpush1.bf16.msra.mxu0 %v685
    %790 = vmatprep.mubr.bf16.mxu0 %v454
    %791 = vmatmul.mubr.bf16.gmra.mrb[0].mxu0 %v453
    %v792 = vpop.f32.mrb[0].mxu0
    %v793 = vadd.f32 %v753, %v792
    %v794 = vpop.f32.mrb[0].mxu0
    %v795 = vpop.f32.mrb[0].mxu0
    %v796 = vpop.f32.mrb[0].mxu0
    %797 = vdwg.mxu0
    %v798 = vlaneseq
    %v799 = vand.u32 %v798, 127
    %vm800 = vcmp.lt.s32.totalorder %v799, 4
    %v801 = vsel %vm800, %v793, -1e+30
    %802 = vmax.xlane.f32.xlu0 %v801
    %v803 = vpop.xlane.xlu0 %802
    %v804 = vsub.f32 %v793, %v803
    %v805 = vmul.f32 %v804, 1.442695
    %v806 = vpow.pop %v805
    %v807 = vsel %vm800, %v806, 0.0
    %808 = vadd.xlane.f32.xlu0 %v807
    %v809 = vpop.xlane.xlu0 %808
    %v810 = vlog2.pop %v809
    %v811 = vmul.f32 %v810, 0.6931472
    %v812 = vsub.f32 %v804, %v811
    %vm813 = vcmask 31744
    %814 = vst.msk [vmem:[%s7] sm:$0xff] %vm813, %v812
    // Predicated region
    $region46: #{cool_model_forward.1} parent=1 // pred_check
      _
    $region47: #{cool_model_forward.1} parent=1 // pred_check_branch
      %816 = sbr.rel (0) target = $region49
    $region48: #{cool_model_forward.1} parent=1 // pred_region
      _
    $region49: #{cool_model_forward.1} parent=1 // pred_fallthru
      _
    // Predicated region
    $region50: #{cool_model_forward.1} parent=1 // pred_check
      _
    $region51: #{cool_model_forward.1} parent=1 // pred_check_branch
      %818 = sbr.rel (0) target = $region53
    $region52: #{cool_model_forward.1} parent=1 // pred_region
      _
    $region53: #{cool_model_forward.1} parent=1 // pred_fallthru
      _
    %819 = vsyncpa [#allocation3], 1
    %820 = vsyncpa [#allocation5], 1
    %821 = vsyncpa [#allocation8], 1

</llo_original>
